<compile_context>
chip_gen: v6e
topology: v6e:2x2x1
jax: 0.10.0
libtpu: 0.0.40
codegen_flags: <defaults>
</compile_context>

<pallas_src>
import warnings
from functools import partial

import numpy as np
import jax
import jax.numpy as jnp
from jax.experimental import pallas as pl
from jax.experimental.pallas import tpu as pltpu

# If XLA ever decides the donated buffer is not reusable for this alias, it
# falls back to a (correct, slightly slower) defensive copy and emits a
# "donated buffers were not usable" warning; silence that narrow case so the
# run stays clean — at these sizes the fallback copy is negligible.
warnings.filterwarnings("ignore", message="Some donated buffers were not usable")


def _alias_identity_kernel(x_hbm_ref, o_hbm_ref, done_ref):
    # The output HBM buffer is aliased to the input HBM buffer
    # (input_output_aliases={0: 0}), so the reshaped data is already in place:
    # no DMA, no MXU/VPU work, no VMEM traffic.  Write one scalar to SMEM
    # scratch so the kernel body is a well-formed, non-empty Mosaic program.
    del x_hbm_ref, o_hbm_ref
    done_ref[0] = jnp.int32(1)


@partial(jax.jit, static_argnums=1, donate_argnums=(0,))
def shallow_forward(x, shape):
    """Equivalent of Shallow(shape).forward(x): torch.reshape(x, shape).

    NOTE: `x` is donated — do not reuse it after this call.
    """
    batch, dimension = shape
    # Row-major flatten to the target 2-D shape — identical to torch.reshape
    # on a contiguous tensor.  Pure metadata (bitcast) under jit.
    x2d = jnp.reshape(x, (batch, dimension))

    # Zero-traffic pallas_call: output aliases the (donated) input buffer,
    # both refs stay in HBM (pl.ANY → no auto-DMA), and the kernel issues no
    # data movement.  With donation there is no copy-before-alias, so the
    # 0-bytes cost_estimate is accurate.
    out = pl.pallas_call(
        _alias_identity_kernel,
        out_shape=jax.ShapeDtypeStruct((batch, dimension), x2d.dtype),
        in_specs=[pl.BlockSpec(memory_space=pl.ANY)],
        out_specs=pl.BlockSpec(memory_space=pl.ANY),
        scratch_shapes=[pltpu.SMEM((1,), jnp.int32)],
        input_output_aliases={0: 0},
        cost_estimate=pl.CostEstimate(flops=0, transcendentals=0,
                                      bytes_accessed=0),
    )(x2d)
    return out


if __name__ == "__main__":
    key = jax.random.PRNGKey(0)
    # Small NCHW input consistent with the module's forward: batch=2, C=4, H=W=16.
    B, C, H, W = 2, 4, 16, 16
    x = jax.random.normal(key, (B, C, H, W), dtype=jnp.float32)

    batch, dimension = B, C * H * W  # (2, 1024)

    # Snapshot the input on host BEFORE the call: `x` is donated and must not
    # be reused afterwards (standard donation semantics).
    x_host = np.asarray(x)

    y = shallow_forward(x, (batch, dimension))
    y = jax.block_until_ready(y)

    # Correctness check against the reference (torch.reshape semantics).
    ref = x_host.reshape(batch, dimension)
    assert y.shape == (batch, dimension)
    assert y.dtype == jnp.float32
    assert np.array_equal(np.asarray(y), ref)

    print("KERNEL_OK")
</pallas_src>

<mosaic_0001>
module attributes {stable_mosaic.version = 11 : i64} {
  func.func @_alias_identity_kernel(%arg0: memref<2x1024xf32, #tpu.memory_space<any>>, %arg1: memref<2x1024xf32, #tpu.memory_space<any>>, %arg2: memref<1xi32, #tpu.memory_space<smem>>) attributes {dimension_semantics = [], scalar_prefetch = 0 : i64, scratch_operands = 1 : i64, tpu.core_type = #tpu.core_type<tc>} {
    %c1_i32 = arith.constant 1 : i32
    %c0 = arith.constant 0 : index
    %0 = memref.load %arg2[%c0] : memref<1xi32, #tpu.memory_space<smem>>
    memref.store %c1_i32, %arg2[%c0] : memref<1xi32, #tpu.memory_space<smem>>
    return
  }
}

</mosaic_0001>

<llo_original>
// kernel: shallow_forward.1
$region0: #{shallow_forward.1}
  #allocation0 [shape = 'u32[]', space=smem, size = 0x4, offset = 0x4, fixed_abs, tag = 'smem constant byte address 0x4 - core index']
  #allocation1 [shape = 'u32[144,128]{1,0:T(1,128)}', space=vmem, size = 0x12000, scoped, tag = 'internal scratch']
  #allocation2 [shape = 's32[1]{0:T(128)}', space=smem, size = 0x200, scoped, tag = 'scratch operand']
  %s0 = inlined_call_operand.hbm [shape: f32[2,1024], index: 0, kind: input, shape index: {}, may-alias: {0,1}]
  %s1 = inlined_call_operand.hbm [shape: f32[2,1024], index: 1, kind: output, shape index: {}, may-alias: {0,1}]
  %s2 = sld [smem:[#allocation0]]
  $region2: #{shallow_forward.1} parent=0
    _
  %s4 = ssub.s32 1, %s2
  %s5 = scalar_select 0, %s4, %s2
  %s6 = scalar_lea.smem [#allocation2], 0
  %7 = sst [smem:[%s6]] 1

</llo_original>
